<compile_context>
chip_gen: v5e
topology: v5e:2x2
jax: 0.10.0
libtpu: 0.0.40
codegen_flags: <defaults>
</compile_context>

<pallas_src>
import functools

import jax
import jax.numpy as jnp
from jax.experimental import pallas as pl
from jax.experimental.pallas import tpu as pltpu

LANE = 128       # TPU lane width
BF16_ROWS = 16   # bf16 sublane packing


def _round_up(x, m):
    return (x + m - 1) // m * m


def _cdiv(a, b):
    return (a + b - 1) // b


# ---------------------------------------------------------------------------
# Pure-JAX references.
# ---------------------------------------------------------------------------
def multiplier_reference(obs, params, num_hidden):
    """Exact module semantics (f32) — also used as the small-batch fast path."""
    h = obs
    for l in range(1, num_hidden + 1):
        h = jnp.maximum(h @ params[f"w{l}"] + params[f"b{l}"], 0.0)
    z = h @ params[f"w{num_hidden + 1}"] + params[f"b{num_hidden + 1}"]
    return jnp.squeeze(jnp.minimum(jnp.logaddexp(z, 0.0), 10000.0), -1)


def _reference_bf16(obs, params, num_hidden):
    """Reference with the kernel's bf16 MXU quantisation (f32 accumulation, f32 head)."""
    h = obs
    for l in range(1, num_hidden + 1):
        h = jnp.maximum(
            jnp.dot(h.astype(jnp.bfloat16), params[f"w{l}"].astype(jnp.bfloat16),
                    preferred_element_type=jnp.float32) + params[f"b{l}"], 0.0)
    z = h @ params[f"w{num_hidden + 1}"] + params[f"b{num_hidden + 1}"]
    return jnp.squeeze(jnp.minimum(jnp.logaddexp(z, 0.0), 10000.0), -1)


# ---------------------------------------------------------------------------
# Parameter packing.
# ---------------------------------------------------------------------------
def _pack_params(params, obs_dim, hidden_sizes):
    """Pack the MLP into (weights, aux) buffers.

    weights : (L*C, C) bf16 — block l holds layer-l weight transposed (out, in),
              zero-padded to (C, C); C = max feature width rounded up to 128.
    aux     : (C, 128) f32  — column l (< L): layer-l bias; column L: output-layer
              weight (H_L,); element (0, L+1): output-layer bias.
    Zero padding keeps the padded math exact (padded rows/cols stay 0 through ReLU).
    """
    num_hidden = len(hidden_sizes)
    feat = _round_up(max(list(hidden_sizes) + [obs_dim]), LANE)
    assert num_hidden + 2 <= LANE, "aux block needs L+2 columns"

    w_buf = jnp.zeros((num_hidden * feat, feat), jnp.bfloat16)
    aux = jnp.zeros((feat, LANE), jnp.float32)

    in_w = obs_dim
    for l in range(num_hidden):
        w = params[f"w{l + 1}"]                       # (in_w, h)
        b = params[f"b{l + 1}"].reshape(-1)           # (h,)
        h = w.shape[1]
        w_buf = w_buf.at[l * feat:l * feat + h, :in_w].set(w.T.astype(jnp.bfloat16))
        aux = aux.at[:h, l].set(b)
        in_w = h

    w_out = params[f"w{num_hidden + 1}"].reshape(-1)  # (H_L,)
    b_out = params[f"b{num_hidden + 1}"].reshape(-1)  # (1,)
    aux = aux.at[:w_out.shape[0], num_hidden].set(w_out)
    aux = aux.at[0, num_hidden + 1].set(b_out[0])
    return w_buf, aux, feat


# ---------------------------------------------------------------------------
# Kernel.
# ---------------------------------------------------------------------------
def _multiplier_kernel(w_ref, aux_ref, obs_ref, out_ref, *, obs_dim, feat, hidden_pads):
    """One batch tile.  Compute layout: features on sublanes, batch on lanes.

    w_ref   : (L*C, C)     bf16 — packed hidden-layer weights (out, in), zero-padded
    aux_ref : (C, 128)     f32  — biases / output head (see _pack_params)
    obs_ref : (TB, obs_dim) f32 — native batch-major observation tile
    out_ref : (1, TB)      f32  — lane-dense output tile
    """
    C = feat
    num_hidden = len(hidden_pads)

    # Batch-major -> feature-major (XLU transpose, otherwise-idle unit), bf16 for the MXU.
    x = jnp.transpose(obs_ref[...]).astype(jnp.bfloat16)        # (obs_dim, TB)

    in_w = obs_dim
    hf = None
    for l, h_pad in enumerate(hidden_pads):
        w = w_ref[l * C:l * C + h_pad, :in_w]                    # (h_pad, in_w) bf16, static
        b = aux_ref[:h_pad, l:l + 1]                             # (h_pad, 1) f32
        z = jnp.dot(w, x, preferred_element_type=jnp.float32)    # MXU, f32 accumulate
        hf = jnp.maximum(z + b, 0.0)                             # (h_pad, TB) f32
        if l + 1 < num_hidden:
            x = hf.astype(jnp.bfloat16)
        in_w = h_pad

    # Final (H -> 1) layer: VPU multiply + cross-sublane (XLU) reduce in f32 —
    # no wasted N=1 MXU pass.
    w_out = aux_ref[:in_w, num_hidden:num_hidden + 1]            # (h_pad_last, 1) f32
    b_out = aux_ref[0:1, num_hidden + 1:num_hidden + 2]          # (1, 1) f32
    z = jnp.sum(hf * w_out, axis=0, keepdims=True) + b_out       # (1, TB) lane-dense

    # softplus (numerically stable) then clamp(max=1e4).
    out_ref[...] = jnp.minimum(jnp.logaddexp(z, 0.0), 10000.0)


# ---------------------------------------------------------------------------
# Wrapper.
# ---------------------------------------------------------------------------
def _choose_tiling(batch, tile_b):
    """Batch-tile width (multiple of 128), #tiles, padded batch.

    Balances tiles to minimise padding and keeps >= 2 tiles for large batches so the
    ("parallel",) grid axis can use both TensorCores on v7x (harmless elsewhere).
    """
    b_lane = _round_up(batch, LANE)
    tile_b = max(LANE, _round_up(tile_b, LANE))
    num_tiles = _cdiv(b_lane, tile_b)
    if b_lane >= 2 * LANE:
        num_tiles = max(num_tiles, 2)
    tb = _round_up(_cdiv(b_lane, num_tiles), LANE)
    num_tiles = _cdiv(b_lane, tb)
    return tb, num_tiles, num_tiles * tb


def _vmem_limit_bytes(num_hidden, feat, tb, obs_dim):
    """Explicit scoped-VMEM limit (v5e default is only 16 MiB; v6e/v7x default 32 MiB)."""
    params_b = num_hidden * feat * feat * 2 + feat * LANE * 4
    obs_blk = tb * _round_up(obs_dim, LANE) * 4      # lane-padded VMEM footprint
    out_blk = tb * 4
    live_b = 6 * feat * tb * 4                        # transposed obs / intermediates headroom
    est = 2 * (params_b + obs_blk + out_blk) + live_b # x2: double-buffering
    return int(min(max(est, 32 * 1024 * 1024), 48 * 1024 * 1024))


def multiplier_forward(obs, params, hidden_sizes, *, tile_b=4096, min_pallas_batch=1024):
    """obs: (B, obs_dim) f32.  params: dict w1,b1,...,w{L+1},b{L+1}, weights stored (in, out).

    Returns clamp(softplus(MLP(obs)), max=1e4) squeezed to shape (B,).
    `tile_b` is the batch-tile width (sweepable, multiple of 128).
    """
    batch, obs_dim = obs.shape
    num_hidden = len(hidden_sizes)
    assert num_hidden >= 1, "at least one hidden layer expected"

    # Small-batch fast path: a 1-tile pallas_call is pure launch/pipeline overhead;
    # the fused XLA graph wins there (exact f32 module semantics).
    if batch < min_pallas_batch:
        return multiplier_reference(obs, params, num_hidden)

    w_buf, aux, feat = _pack_params(params, obs_dim, hidden_sizes)
    tb, num_tiles, b_pad = _choose_tiling(batch, tile_b)

    # Pad only the batch deficit (no transpose / full re-materialisation of obs).
    obs_in = obs if b_pad == batch else jnp.pad(obs, ((0, b_pad - batch), (0, 0)))

    hidden_pads = tuple(_round_up(h, BF16_ROWS) for h in hidden_sizes)
    kernel = functools.partial(
        _multiplier_kernel, obs_dim=obs_dim, feat=feat, hidden_pads=hidden_pads)

    out = pl.pallas_call(
        kernel,
        out_shape=jax.ShapeDtypeStruct((1, b_pad), jnp.float32),
        grid_spec=pltpu.PrefetchScalarGridSpec(
            num_scalar_prefetch=0,
            grid=(num_tiles,),
            in_specs=[
                # Packed parameters: constant block index -> one DMA, VMEM-resident
                # across every batch tile.
                pl.BlockSpec(w_buf.shape, lambda i: (0, 0)),
                pl.BlockSpec(aux.shape, lambda i: (0, 0)),
                # obs in native batch-major layout; last block dim equals the full
                # array dim, so the (8, 128) rule holds without padding obs_dim.
                pl.BlockSpec((tb, obs_dim), lambda i: (i, 0)),
            ],
            # Lane-dense output tile: full-width stores.
            out_specs=pl.BlockSpec((1, tb), lambda i: (0, i)),
        ),
        compiler_params=pltpu.CompilerParams(
            dimension_semantics=("parallel",),
            vmem_limit_bytes=_vmem_limit_bytes(num_hidden, feat, tb, obs_dim),
        ),
    )(w_buf, aux, obs_in)

    return out[0, :batch]


# ---------------------------------------------------------------------------
# Deterministic synthetic init matching the module's Linear shapes, stored (in, out).
# ---------------------------------------------------------------------------
def init_params(key, obs_dim, hidden_sizes):
    sizes = [obs_dim] + list(hidden_sizes) + [1]
    params = {}
    for i in range(len(sizes) - 1):
        key, kw, kb = jax.random.split(key, 3)
        fan_in, fan_out = sizes[i], sizes[i + 1]
        bound = 1.0 / jnp.sqrt(fan_in)
        params[f"w{i + 1}"] = jax.random.uniform(kw, (fan_in, fan_out), jnp.float32, -bound, bound)
        params[f"b{i + 1}"] = jax.random.uniform(kb, (1, fan_out), jnp.float32, -bound, bound)
    return params


if __name__ == "__main__":
    key = jax.random.PRNGKey(0)
    key, k_obs, k_param = jax.random.split(key, 3)

    batch, obs_dim = 8, 16
    hidden_sizes = (32, 32)

    params = init_params(k_param, obs_dim, hidden_sizes)
    obs = jax.random.normal(k_obs, (batch, obs_dim), jnp.float32)

    # Force the Pallas path (small batches normally dispatch to the fused-XLA fast path).
    out = multiplier_forward(obs, params, hidden_sizes, min_pallas_batch=0)
    jax.block_until_ready(out)
    assert out.shape == (batch,)

    exp_bf16 = _reference_bf16(obs, params, len(hidden_sizes))
    exp_f32 = multiplier_reference(obs, params, len(hidden_sizes))
    assert jnp.allclose(out, exp_bf16, atol=1e-3, rtol=1e-3), (out, exp_bf16)
    assert jnp.allclose(out, exp_f32, atol=5e-2, rtol=5e-2), (out, exp_f32)

    # Multi-tile, uneven batch, >=2-tile (v7x megacore) path.
    key, k_obs2 = jax.random.split(key)
    batch2 = 300
    obs2 = jax.random.normal(k_obs2, (batch2, obs_dim), jnp.float32)
    out2 = multiplier_forward(obs2, params, hidden_sizes, tile_b=128, min_pallas_batch=0)
    jax.block_until_ready(out2)
    assert out2.shape == (batch2,)
    assert jnp.allclose(out2, _reference_bf16(obs2, params, len(hidden_sizes)),
                        atol=1e-3, rtol=1e-3)

    # Default small-batch dispatch (fused XLA) matches the f32 reference exactly.
    out3 = multiplier_forward(obs, params, hidden_sizes)
    assert jnp.allclose(out3, exp_f32, atol=1e-5, rtol=1e-5)

    print("KERNEL_OK")
</pallas_src>

<mosaic_0001>
module attributes {stable_mosaic.version = 11 : i64} {
  func.func @_multiplier_kernel(%arg0: i32, %arg1: memref<256x128xbf16, #tpu.memory_space<vmem>>, %arg2: memref<128x128xf32, #tpu.memory_space<vmem>>, %arg3: memref<128x16xf32, #tpu.memory_space<vmem>>, %arg4: memref<1x128xf32, #tpu.memory_space<vmem>>) attributes {dimension_semantics = [#tpu.dimension_semantics<parallel>], iteration_bounds = array<i64: 1>, scalar_prefetch = 0 : i64, scratch_operands = 0 : i64, tpu.core_type = #tpu.core_type<tc>, window_params = [{pipeline_mode = #tpu.pipeline_mode<synchronous>, transform_indices = @transform_0, window_bounds = array<i64: 256, 128>}, {pipeline_mode = #tpu.pipeline_mode<synchronous>, transform_indices = @transform_1, window_bounds = array<i64: 128, 128>}, {transform_indices = @transform_2, window_bounds = array<i64: 128, 16>}, {transform_indices = @transform_3, window_bounds = array<i64: 1, 128>}]} {
    %c0 = arith.constant 0 : index
    %c0_0 = arith.constant 0 : index
    %0 = vector.load %arg3[%c0, %c0_0] : memref<128x16xf32, #tpu.memory_space<vmem>>, vector<128x16xf32>
    %1 = tpu.transpose %0, [1, 0] : vector<128x16xf32> -> vector<16x128xf32>
    %2 = arith.truncf %1 : vector<16x128xf32> to vector<16x128xbf16>
    %c0_1 = arith.constant 0 : index
    %c0_2 = arith.constant 0 : index
    %3 = vector.load %arg1[%c0_1, %c0_2] : memref<256x128xbf16, #tpu.memory_space<vmem>>, vector<32x16xbf16>
    %c0_3 = arith.constant 0 : index
    %c0_4 = arith.constant 0 : index
    %4 = vector.load %arg2[%c0_3, %c0_4] : memref<128x128xf32, #tpu.memory_space<vmem>>, vector<32x1xf32>
    %cst = arith.constant dense<0.000000e+00> : vector<32x128xf32>
    %5 = tpu.matmul %3, %2, %cst {dimension_numbers = #tpu.dot_dimension_numbers<[1], [0], [0], [1], [0, 0, 1, 1], [], []>} : vector<32x16xbf16>, vector<16x128xbf16>, vector<32x128xf32> -> vector<32x128xf32>
    %6 = vector.broadcast %4 : vector<32x1xf32> to vector<32x128xf32>
    %7 = arith.addf %5, %6 : vector<32x128xf32>
    %cst_5 = arith.constant 0.000000e+00 : f32
    %8 = vector.broadcast %cst_5 : f32 to vector<32x128xf32>
    %9 = arith.maximumf %7, %8 : vector<32x128xf32>
    %10 = arith.truncf %9 : vector<32x128xf32> to vector<32x128xbf16>
    %c128 = arith.constant 128 : index
    %c0_6 = arith.constant 0 : index
    %11 = vector.load %arg1[%c128, %c0_6] : memref<256x128xbf16, #tpu.memory_space<vmem>>, vector<32x32xbf16>
    %c0_7 = arith.constant 0 : index
    %c1 = arith.constant 1 : index
    %12 = vector.load %arg2[%c0_7, %c1] : memref<128x128xf32, #tpu.memory_space<vmem>>, vector<32x1xf32>
    %cst_8 = arith.constant dense<0.000000e+00> : vector<32x128xf32>
    %13 = tpu.matmul %11, %10, %cst_8 {dimension_numbers = #tpu.dot_dimension_numbers<[1], [0], [0], [1], [0, 0, 1, 1], [], []>} : vector<32x32xbf16>, vector<32x128xbf16>, vector<32x128xf32> -> vector<32x128xf32>
    %14 = vector.broadcast %12 : vector<32x1xf32> to vector<32x128xf32>
    %15 = arith.addf %13, %14 : vector<32x128xf32>
    %cst_9 = arith.constant 0.000000e+00 : f32
    %16 = vector.broadcast %cst_9 : f32 to vector<32x128xf32>
    %17 = arith.maximumf %15, %16 : vector<32x128xf32>
    %c0_10 = arith.constant 0 : index
    %c2 = arith.constant 2 : index
    %18 = vector.load %arg2[%c0_10, %c2] : memref<128x128xf32, #tpu.memory_space<vmem>>, vector<32x1xf32>
    %c0_11 = arith.constant 0 : index
    %c3 = arith.constant 3 : index
    %19 = vector.load %arg2[%c0_11, %c3] : memref<128x128xf32, #tpu.memory_space<vmem>>, vector<1x1xf32>
    %20 = vector.broadcast %18 : vector<32x1xf32> to vector<32x128xf32>
    %21 = arith.mulf %17, %20 : vector<32x128xf32>
    %cst_12 = arith.constant dense<0.000000e+00> : vector<128xf32>
    %22 = vector.multi_reduction <add>, %21, %cst_12 [0] : vector<32x128xf32> to vector<128xf32>
    %23 = vector.shape_cast %22 : vector<128xf32> to vector<1x128xf32>
    %24 = vector.broadcast %19 : vector<1x1xf32> to vector<1x128xf32>
    %25 = arith.addf %23, %24 : vector<1x128xf32>
    %cst_13 = arith.constant 0.000000e+00 : f32
    %26 = vector.broadcast %cst_13 : f32 to vector<1x128xf32>
    %27 = arith.maximumf %25, %26 : vector<1x128xf32>
    %28 = vector.broadcast %cst_13 : f32 to vector<1x128xf32>
    %29 = arith.subf %25, %28 : vector<1x128xf32>
    %30 = arith.cmpf one, %29, %29 : vector<1x128xf32>
    %31 = vector.broadcast %cst_13 : f32 to vector<1x128xf32>
    %32 = arith.addf %25, %31 : vector<1x128xf32>
    %33 = math.absf %29 : vector<1x128xf32>
    %cst_14 = arith.constant 0.000000e+00 : f32
    %34 = vector.broadcast %cst_14 : f32 to vector<1x128xf32>
    %35 = arith.subf %34, %33 : vector<1x128xf32>
    %36 = math.exp %35 : vector<1x128xf32>
    %37 = math.log1p %36 : vector<1x128xf32>
    %38 = arith.addf %27, %37 : vector<1x128xf32>
    %39 = arith.select %30, %32, %38 : vector<1x128xi1>, vector<1x128xf32>
    %cst_15 = arith.constant 1.000000e+04 : f32
    %40 = vector.broadcast %cst_15 : f32 to vector<1x128xf32>
    %41 = arith.minimumf %39, %40 : vector<1x128xf32>
    %c0_16 = arith.constant 0 : index
    %c0_17 = arith.constant 0 : index
    %42 = vector.load %arg4[%c0_16, %c0_17] : memref<1x128xf32, #tpu.memory_space<vmem>>, vector<1x128xf32>
    tpu.vector_store %arg4[%c0_16, %c0_17], %41 {strides = array<i32>} : memref<1x128xf32, #tpu.memory_space<vmem>>, vector<1x128xf32>,
    return
  }
  func.func @transform_0(%arg0: i32) -> (i32, i32) {
    %c0_i32 = arith.constant 0 : i32
    %c0_i32_0 = arith.constant 0 : i32
    %c0_i32_1 = arith.constant 0 : i32
    return %c0_i32, %c0_i32_0 : i32, i32
  }
  func.func @transform_1(%arg0: i32) -> (i32, i32) {
    %c0_i32 = arith.constant 0 : i32
    %c0_i32_0 = arith.constant 0 : i32
    %c0_i32_1 = arith.constant 0 : i32
    return %c0_i32, %c0_i32_0 : i32, i32
  }
  func.func @transform_2(%arg0: i32) -> (i32, i32) {
    %c0_i32 = arith.constant 0 : i32
    %c0_i32_0 = arith.constant 0 : i32
    return %arg0, %c0_i32 : i32, i32
  }
  func.func @transform_3(%arg0: i32) -> (i32, i32) {
    %c0_i32 = arith.constant 0 : i32
    %c0_i32_0 = arith.constant 0 : i32
    return %c0_i32, %arg0 : i32, i32
  }
}

</mosaic_0001>

<llo_original>
// kernel: tpu_custom_call.1
$region0: #{tpu_custom_call.1}
  #allocation0 [shape = 'u32[]', space=smem, size = 0x4, offset = 0x4, fixed_abs, tag = 'smem constant byte address 0x4 - core index']
  #allocation1 [shape = 'u32[72,128]{1,0:T(1,128)}', space=vmem, size = 0x9000, scoped, tag = 'internal scratch']
  %s0 = inlined_call_operand.vmem [shape: bf16[256,128], index: 0, kind: input, shape index: {}]
  %s1 = inlined_call_operand.hbm [shape: f32[128,128], index: 1, kind: input, shape index: {}]
  %s2 = inlined_call_operand.vmem [shape: f32[128,16], index: 2, kind: input, shape index: {}]
  %s3 = inlined_call_operand.hbm [shape: f32[1,128], index: 3, kind: output, shape index: {}]
  %s4 = sld [smem:[#allocation0]]
  $region26: #{tpu_custom_call.1} parent=0
    _
  %s6 = ssub.s32 1, %s4
  %s7 = scalar_select 0, %s6, %s4
  $region1: #{tpu_custom_call.1} parent=0
    #allocation2 [shape = 'u8[65536]{0}', space=vmem, size = 0x10000, scoped, tag = 'input window, operand 1, single buffered']
    #allocation3 [shape = 's32[1]{0}', space=sflag, size = 0x4, scoped, tag = 'scoped memory for tpu_custom_call.1']
    #allocation4 [shape = 's32[1]{0}', space=sflag, size = 0x4, scoped, tag = 'scoped memory for tpu_custom_call.1']
    #allocation5 [shape = 'u8[512]{0}', space=vmem, size = 0x400, scoped, tag = 'output window, operand 0, single buffered']
    %8 = vsyncpa [#allocation3], 0
    %9 = vsyncpa [#allocation4], 0
    // Predicated region
    $region2: #{tpu_custom_call.1} parent=1 // pred_check
      _
    $region3: #{tpu_custom_call.1} parent=1 // pred_check_branch
      %11 = sbr.rel (0) target = $region5
    $region4: #{tpu_custom_call.1} parent=1 // pred_region
      _
    $region5: #{tpu_custom_call.1} parent=1 // pred_fallthru
      _
    // Predicated region
    $region6: #{tpu_custom_call.1} parent=1 // pred_check
      _
    $region7: #{tpu_custom_call.1} parent=1 // pred_check_branch
      %13 = sbr.rel (0) target = $region9
    $region8: #{tpu_custom_call.1} parent=1 // pred_region
      %15 = vsyncadd [#allocation3], 0
      %s16 = sshll.u32 %s1, 4
      %s17 = int_to_ptr.hbm [resolvable:$true] %s16
      %s18 = sshll.u32 [#allocation2], 4
      %s19 = int_to_ptr.vmem [resolvable:$true] %s18
      %24 = dma.hbm_to_vmem [thread:$0]  %s17, 2048, %s19, [#allocation3], 128, 128, 8
    $region9: #{tpu_custom_call.1} parent=1 // pred_fallthru
      _
    // Predicated region
    $region10: #{tpu_custom_call.1} parent=1 // pred_check
      _
    $region11: #{tpu_custom_call.1} parent=1 // pred_check_branch
      %26 = sbr.rel (0) target = $region13
    $region12: #{tpu_custom_call.1} parent=1 // pred_region
      _
    $region13: #{tpu_custom_call.1} parent=1 // pred_fallthru
      _
    // Predicated region
    $region14: #{tpu_custom_call.1} parent=1 // pred_check
      _
    $region15: #{tpu_custom_call.1} parent=1 // pred_check_branch
      %28 = sbr.rel (0) target = $region17
    $region16: #{tpu_custom_call.1} parent=1 // pred_region
      %30 = dma.done [#allocation3], 2048
    $region17: #{tpu_custom_call.1} parent=1 // pred_fallthru
      _
    %v32 = vld [vmem:[%s2] sm:$0xff]
    %v33 = vld [vmem:[%s2 + $0x8] sm:$0xff]
    %v34 = vld [vmem:[%s2 + $0x10] sm:$0xff]
    %v35 = vld [vmem:[%s2 + $0x18] sm:$0xff]
    %v36 = vld [vmem:[%s2 + $0x20] sm:$0xff]
    %v37 = vld [vmem:[%s2 + $0x28] sm:$0xff]
    %v38 = vld [vmem:[%s2 + $0x30] sm:$0xff]
    %v39 = vld [vmem:[%s2 + $0x38] sm:$0xff]
    %v40 = vld [vmem:[%s2 + $0x40] sm:$0xff]
    %v41 = vld [vmem:[%s2 + $0x48] sm:$0xff]
    %v42 = vld [vmem:[%s2 + $0x50] sm:$0xff]
    %v43 = vld [vmem:[%s2 + $0x58] sm:$0xff]
    %v44 = vld [vmem:[%s2 + $0x60] sm:$0xff]
    %v45 = vld [vmem:[%s2 + $0x68] sm:$0xff]
    %v46 = vld [vmem:[%s2 + $0x70] sm:$0xff]
    %v47 = vld [vmem:[%s2 + $0x78] sm:$0xff]
    %48 = vxpose.xlu0.b32.start [1/16] %v32, 128
    %49 = vxpose.xlu0.b32.cont [2/16] %v33, 128
    %50 = vxpose.xlu0.b32.cont [3/16] %v34, 128
    %51 = vxpose.xlu0.b32.cont [4/16] %v35, 128
    %52 = vxpose.xlu0.b32.cont [5/16] %v36, 128
    %53 = vxpose.xlu0.b32.cont [6/16] %v37, 128
    %54 = vxpose.xlu0.b32.cont [7/16] %v38, 128
    %55 = vxpose.xlu0.b32.cont [8/16] %v39, 128
    %56 = vxpose.xlu0.b32.cont [9/16] %v40, 128
    %57 = vxpose.xlu0.b32.cont [10/16] %v41, 128
    %58 = vxpose.xlu0.b32.cont [11/16] %v42, 128
    %59 = vxpose.xlu0.b32.cont [12/16] %v43, 128
    %60 = vxpose.xlu0.b32.cont [13/16] %v44, 128
    %61 = vxpose.xlu0.b32.cont [14/16] %v45, 128
    %62 = vxpose.xlu0.b32.cont [15/16] %v46, 128
    %63 = vxpose.xlu0.b32.end [16/16] %v47, 128
    %v64 = vpop.trf.xlu0
    %v65 = vpop.trf.xlu0
    %v66 = vpop.trf.xlu0
    %v67 = vpop.trf.xlu0
    %v68 = vpop.trf.xlu0
    %v69 = vpop.trf.xlu0
    %v70 = vpop.trf.xlu0
    %v71 = vpop.trf.xlu0
    %v72 = vpop.trf.xlu0
    %v73 = vpop.trf.xlu0
    %v74 = vpop.trf.xlu0
    %v75 = vpop.trf.xlu0
    %v76 = vpop.trf.xlu0
    %v77 = vpop.trf.xlu0
    %v78 = vpop.trf.xlu0
    %v79 = vpop.trf.xlu0
    %v80 = vpack.c.bf16 %v65, %v64
    %v81 = vld [vmem:[%s0] sm:$0xf]
    %v82 = vld [vmem:[%s0 + $0x4] sm:$0xf]
    %v83 = vld [vmem:[%s0 + $0x8] sm:$0xf]
    %v84 = vld [vmem:[%s0 + $0xc] sm:$0xf]
    %v85 = vld [vmem:[#allocation2] sm:$0xff]
    %v86 = vld [vmem:[#allocation2 + $0x8] sm:$0xff]
    %v87 = vld [vmem:[#allocation2 + $0x10] sm:$0xff]
    %v88 = vld [vmem:[#allocation2 + $0x18] sm:$0xff]
    %90 = vset.pattern.permute.xlu0 0
    %91 = vperm.xlu0 %90, %v85
    %v92 = vpop.permute.xlu0 %91
    %95 = vset.pattern.permute.xlu0 0
    %96 = vperm.xlu0 %95, %v86
    %v97 = vpop.permute.xlu0 %96
    %100 = vset.pattern.permute.xlu0 0
    %101 = vperm.xlu0 %100, %v87
    %v102 = vpop.permute.xlu0 %101
    %105 = vset.pattern.permute.xlu0 0
    %106 = vperm.xlu0 %105, %v88
    %v107 = vpop.permute.xlu0 %106
    %v113 = vunpack.c.l.b16 %v81
    %v114 = vunpack.c.l.b16 %v82
    %v115 = vunpack.c.l.b16 %v83
    %v116 = vunpack.c.l.b16 %v84
    %v117 = vpack.c.b16 %v114, %v113
    %v118 = vpack.c.b16 %v116, %v115
    %vm119 = vcmask 130048
    %v121 = vsel %vm119, %v117, 0
    %v124 = vsel %vm119, %v118, 0
    %126 = vmatpush.bf16.msra.mxu0 0
    %127 = vmatpush.bf16.msra.mxu0 0
    %128 = vmatpush.bf16.msra.mxu0 0
    %129 = vmatpush.bf16.msra.mxu0 0
    %130 = vmatpush.bf16.msra.mxu0 0
    %131 = vmatpush.bf16.msra.mxu0 0
    %132 = vmatpush.bf16.msra.mxu0 0
    %133 = vmatpush.bf16.msra.mxu0 %v80
    %134 = vmatmul.bf16.gmra.mxu0 %v121
    %v135 = vpop.f32.mrf.mxu0
    %v136 = vadd.f32 %v92, %v135
    %v137 = vpop.f32.mrf.mxu0
    %v138 = vadd.f32 %v97, %v137
    %139 = vmatmul.bf16.gmra.mxu0 %v124
    %v140 = vpop.f32.mrf.mxu0
    %v141 = vadd.f32 %v102, %v140
    %v142 = vpop.f32.mrf.mxu0
    %v143 = vadd.f32 %v107, %v142
    %144 = vdwg.mxu0
    %v145 = vmax.f32 %v136, 0.0
    %v146 = vmax.f32 %v138, 0.0
    %v147 = vmax.f32 %v141, 0.0
    %v148 = vmax.f32 %v143, 0.0
    %v149 = vpack.c.bf16 %v146, %v145
    %v150 = vpack.c.bf16 %v148, %v147
    %v151 = vld [vmem:[%s0 + $0x40] sm:$0xf]
    %v152 = vld [vmem:[%s0 + $0x44] sm:$0xf]
    %v153 = vld [vmem:[%s0 + $0x48] sm:$0xf]
    %v154 = vld [vmem:[%s0 + $0x4c] sm:$0xf]
    %155 = vset.pattern.permute.xlu0 1
    %156 = vperm.xlu0 %155, %v85
    %v157 = vpop.permute.xlu0 %156
    %159 = vset.pattern.permute.xlu0 1
    %160 = vperm.xlu0 %159, %v86
    %v161 = vpop.permute.xlu0 %160
    %163 = vset.pattern.permute.xlu0 1
    %164 = vperm.xlu0 %163, %v87
    %v165 = vpop.permute.xlu0 %164
    %167 = vset.pattern.permute.xlu0 1
    %168 = vperm.xlu0 %167, %v88
    %v169 = vpop.permute.xlu0 %168
    %v175 = vunpack.c.l.b16 %v151
    %v176 = vunpack.c.l.b16 %v152
    %v177 = vunpack.c.l.b16 %v153
    %v178 = vunpack.c.l.b16 %v154
    %v179 = vpack.c.b16 %v176, %v175
    %v180 = vpack.c.b16 %v178, %v177
    %vm181 = vcmask 261120
    %v183 = vsel %vm181, %v179, 0
    %v186 = vsel %vm181, %v180, 0
    %188 = vmatpush.bf16.msra.mxu0 0
    %189 = vmatpush.bf16.msra.mxu0 0
    %190 = vmatpush.bf16.msra.mxu0 0
    %191 = vmatpush.bf16.msra.mxu0 0
    %192 = vmatpush.bf16.msra.mxu0 0
    %193 = vmatpush.bf16.msra.mxu0 0
    %194 = vmatpush.bf16.msra.mxu0 %v150
    %195 = vmatpush.bf16.msra.mxu0 %v149
    %196 = vmatmul.bf16.gmra.mxu0 %v183
    %v197 = vpop.f32.mrf.mxu0
    %v198 = vadd.f32 %v157, %v197
    %v199 = vpop.f32.mrf.mxu0
    %v200 = vadd.f32 %v161, %v199
    %201 = vmatmul.bf16.gmra.mxu0 %v186
    %v202 = vpop.f32.mrf.mxu0
    %v203 = vadd.f32 %v165, %v202
    %v204 = vpop.f32.mrf.mxu0
    %v205 = vadd.f32 %v169, %v204
    %206 = vdwg.mxu0
    %v207 = vmax.f32 %v198, 0.0
    %v208 = vmax.f32 %v200, 0.0
    %v209 = vmax.f32 %v203, 0.0
    %v210 = vmax.f32 %v205, 0.0
    %v211 = vld [vmem:[#allocation2] sm:$0x1]
    %212 = vset.pattern.permute.xlu0 2
    %213 = vperm.xlu0 %212, %v85
    %v214 = vpop.permute.xlu0 %213
    %216 = vset.pattern.permute.xlu0 2
    %217 = vperm.xlu0 %216, %v86
    %v218 = vpop.permute.xlu0 %217
    %220 = vset.pattern.permute.xlu0 2
    %221 = vperm.xlu0 %220, %v87
    %v222 = vpop.permute.xlu0 %221
    %224 = vset.pattern.permute.xlu0 2
    %225 = vperm.xlu0 %224, %v88
    %v226 = vpop.permute.xlu0 %225
    %v228 = vmul.f32 %v207, %v214
    %v229 = vmul.f32 %v208, %v218
    %v230 = vmul.f32 %v209, %v222
    %v231 = vmul.f32 %v210, %v226
    %v232 = vadd.f32 %v228, %v229
    %v233 = vadd.f32 %v232, %v230
    %v234 = vadd.f32 %v233, %v231
    %v235 = vrot.slane %v234, 4
    %v236 = vadd.f32 %v234, %v235
    %v237 = vrot.slane %v236, 2
    %v238 = vadd.f32 %v236, %v237
    %v239 = vrot.slane %v238, 1
    %v240 = vadd.f32 %v238, %v239
    %242 = vset.pattern.permute.xlu0 3
    %243 = vperm.xlu0 %242, %v211
    %v244 = vpop.permute.xlu0 %243
    %v246 = vadd.f32 %v240, %v244
    %v247 = vmax.f32 %v246, 0.0
    %vm248 = vcmp.ne.f32.partialorder %v246, %v246
    %v249 = vadd.f32 %v246, 0.0
    %v250 = vand.u32 2147483647, %v246
    %v251 = vsub.f32 0.0, %v250
    %v252 = vmul.f32 %v251, 1.442695
    %v253 = vpow.pop %v252
    %v254 = vadd.f32 %v253, 1.0
    %v255 = vlog2.pop %v254
    %v256 = vmul.f32 %v255, 0.6931472
    %v257 = vmul.f32 -0.5, %v253
    %v258 = vadd.f32 %v257, 1.0
    %v259 = vmul.f32 %v258, %v253
    %v260 = vand.u32 2147483647, %v253
    %vm261 = vcmp.lt.f32.partialorder %v260, 0.0004427343
    %v262 = vsel %vm261, %v259, %v256
    %v263 = vadd.f32 %v247, %v262
    %v264 = vsel %vm248, %v249, %v263
    %v265 = vmin.f32 %v264, 10000.0
    %266 = vst [vmem:[#allocation5] sm:$0x1] %v265
    // Predicated region
    $region18: #{tpu_custom_call.1} parent=1 // pred_check
      _
    $region19: #{tpu_custom_call.1} parent=1 // pred_check_branch
      %268 = sbr.rel (0) target = $region21
    $region20: #{tpu_custom_call.1} parent=1 // pred_region
      %270 = vsyncadd [#allocation4], 0
      %s272 = sshll.u32 [#allocation5], 4
      %s273 = int_to_ptr.vmem [resolvable:$true] %s272
      %s274 = sshll.u32 %s3, 4
      %s275 = int_to_ptr.hbm [resolvable:$true] %s274
      %277 = dma.vmem_to_hbm [thread:$0]  %s273, 16, %s275, [#allocation4]
    $region21: #{tpu_custom_call.1} parent=1 // pred_fallthru
      _
    // Predicated region
    $region22: #{tpu_custom_call.1} parent=1 // pred_check
      _
    $region23: #{tpu_custom_call.1} parent=1 // pred_check_branch
      %279 = sbr.rel (0) target = $region25
    $region24: #{tpu_custom_call.1} parent=1 // pred_region
      %281 = dma.done [#allocation4], 16
    $region25: #{tpu_custom_call.1} parent=1 // pred_fallthru
      _
    %282 = vsyncpa [#allocation3], 1
    %283 = vsyncpa [#allocation4], 1

</llo_original>
